<compile_context>
chip_gen: v7x
topology: tpu7x:2x2x1
jax: 0.10.0
libtpu: 0.0.40
codegen_flags: <defaults>
</compile_context>

<pallas_src>
import jax
import jax.numpy as jnp
from jax.experimental import pallas as pl
from jax.experimental.pallas import tpu as pltpu


def _round_up(n, m):
    return (n + m - 1) // m * m


def mlp_kernel(x_ref, w1_ref, b1_ref, w2_ref, b2_ref, w3_ref, b3_ref,
               w4_ref, b4_ref, o_ref):
    """Fused 4-layer MLP forward for one (TILE_B, 784) batch tile.

    Matmuls run on the MXU in bf16 with f32 accumulation; bias+ReLU on the VPU
    in f32, then cast back to bf16 to feed the next MXU stage. The last layer
    is padded to 128 outputs so the store is a full, unmasked 128-lane slab.
    """
    x = x_ref[...]                                                       # [TB, 784] bf16

    h1 = jnp.dot(x, w1_ref[...], preferred_element_type=jnp.float32)    # [TB, 256] f32
    h1 = jnp.maximum(h1 + b1_ref[...], 0.0).astype(jnp.bfloat16)

    h2 = jnp.dot(h1, w2_ref[...], preferred_element_type=jnp.float32)   # [TB, 128] f32
    h2 = jnp.maximum(h2 + b2_ref[...], 0.0).astype(jnp.bfloat16)

    h3 = jnp.dot(h2, w3_ref[...], preferred_element_type=jnp.float32)   # [TB, 64] f32
    h3 = jnp.maximum(h3 + b3_ref[...], 0.0).astype(jnp.bfloat16)

    h4 = jnp.dot(h3, w4_ref[...], preferred_element_type=jnp.float32)   # [TB, 128] f32
    o_ref[...] = h4 + b4_ref[...]                                        # f32 store, no cast


def _prepare_params(params):
    """Cast weights to bf16, keep biases f32, zero-pad last layer to 128 lanes."""
    (w1, b1), (w2, b2), (w3, b3), (w4, b4) = params
    w4p = jnp.zeros((64, 128), jnp.float32).at[:, :10].set(w4)
    b4p = jnp.zeros((1, 128), jnp.float32).at[:, :10].set(b4)
    return (w1.astype(jnp.bfloat16), b1.astype(jnp.float32),
            w2.astype(jnp.bfloat16), b2.astype(jnp.float32),
            w3.astype(jnp.bfloat16), b3.astype(jnp.float32),
            w4p.astype(jnp.bfloat16), b4p.astype(jnp.float32))


def number_identifier_forward(x_nchw, params):
    """Equivalent of NumberIdentifier.forward: flatten then run the batch-tiled MLP."""
    B = x_nchw.shape[0]
    x_flat = x_nchw.reshape(B, -1)
    assert x_flat.shape[1] == 784, "expected 784 input features"

    # Pick the batch tile: small batches run as a single 8-aligned tile
    # (no grid overhead); large batches use 512-row tiles (fills the MXU,
    # ~0.8 MiB bf16 input tile that double-buffers cleanly and amortizes
    # the per-grid-step overhead).
    B_pad = _round_up(max(B, 1), 8)
    if B_pad <= 512:
        tile_b = B_pad
    else:
        tile_b = 512
        B_pad = _round_up(B, tile_b)

    if B_pad != B:
        x_flat = jnp.pad(x_flat, ((0, B_pad - B), (0, 0)))
    x_bf16 = x_flat.astype(jnp.bfloat16)

    w1, b1, w2, b2, w3, b3, w4, b4 = _prepare_params(params)

    const = lambda i: (0, 0)  # weights/biases resident across all grid steps
    out = pl.pallas_call(
        mlp_kernel,
        out_shape=jax.ShapeDtypeStruct((B_pad, 128), jnp.float32),
        grid=(B_pad // tile_b,),
        in_specs=[
            pl.BlockSpec((tile_b, 784), lambda i: (i, 0)),   # x: streamed per tile
            pl.BlockSpec((784, 256), const),                 # w1
            pl.BlockSpec((1, 256), const),                   # b1
            pl.BlockSpec((256, 128), const),                 # w2
            pl.BlockSpec((1, 128), const),                   # b2
            pl.BlockSpec((128, 64), const),                  # w3
            pl.BlockSpec((1, 64), const),                    # b3
            pl.BlockSpec((64, 128), const),                  # w4 (padded to 128)
            pl.BlockSpec((1, 128), const),                   # b4 (padded to 128)
        ],
        out_specs=pl.BlockSpec((tile_b, 128), lambda i: (i, 0)),
        compiler_params=pltpu.CompilerParams(
            dimension_semantics=("parallel",),               # megacore on v7x
            vmem_limit_bytes=32 * 1024 * 1024,               # safe on v5e/v6e/v7x
        ),
    )(x_bf16, w1, b1, w2, b2, w3, b3, w4, b4)

    # Drop the batch padding and the 118 zero lane-padding columns.
    return out[:B, :10]


def number_identifier_predict(x_nchw, params):
    """Equivalent of NumberIdentifier.predict: flattened argmax over all logits."""
    logits = number_identifier_forward(x_nchw, params)
    # torch.argmax(tensor) flattens -> single scalar index.
    return jnp.argmax(logits.reshape(-1))


def init_params(key):
    """Deterministic init matching nn.Linear shapes (weights stored [in, out])."""
    dims = [(784, 256), (256, 128), (128, 64), (64, 10)]
    params = []
    for fan_in, fan_out in dims:
        key, kw, kb = jax.random.split(key, 3)
        bound = 1.0 / jnp.sqrt(fan_in)
        w = jax.random.uniform(kw, (fan_in, fan_out), jnp.float32, -bound, bound)
        b = jax.random.uniform(kb, (1, fan_out), jnp.float32, -bound, bound)
        params.append((w, b))
    return params


def _reference_forward(x_nchw, params):
    """Pure-JAX f32 reference for correctness check."""
    B = x_nchw.shape[0]
    h = x_nchw.reshape(B, -1).astype(jnp.float32)
    (w1, b1), (w2, b2), (w3, b3), (w4, b4) = params
    h = jnp.maximum(h @ w1 + b1, 0.0)
    h = jnp.maximum(h @ w2 + b2, 0.0)
    h = jnp.maximum(h @ w3 + b3, 0.0)
    return h @ w4 + b4


if __name__ == "__main__":
    key = jax.random.PRNGKey(0)
    key, kx = jax.random.split(key)
    params = init_params(key)

    # Small MNIST-like input: NCHW [2, 1, 28, 28] -> flattens to [2, 784].
    x_small = jax.random.normal(kx, (2, 1, 28, 28), jnp.float32)
    logits = jax.block_until_ready(number_identifier_forward(x_small, params))
    ref = _reference_forward(x_small, params)
    assert logits.shape == (2, 10)
    # bf16 weights/activations (f32 accumulation) -> loosened tolerance vs f32 ref.
    assert jnp.allclose(logits, ref, atol=5e-2, rtol=5e-2), "mismatch vs reference (B=2)"

    pred = jax.block_until_ready(number_identifier_predict(x_small, params))
    assert pred.shape == ()

    # Exercise the multi-tile grid path (B=600 -> padded to 1024, grid=(2,)).
    key, kx2 = jax.random.split(key)
    x_big = jax.random.normal(kx2, (600, 1, 28, 28), jnp.float32)
    logits_big = jax.block_until_ready(number_identifier_forward(x_big, params))
    ref_big = _reference_forward(x_big, params)
    assert logits_big.shape == (600, 10)
    assert jnp.allclose(logits_big, ref_big, atol=5e-2, rtol=5e-2), "mismatch vs reference (B=600)"

    print("KERNEL_OK")
</pallas_src>

<mosaic_0001>
module attributes {stable_mosaic.version = 11 : i64} {
  func.func @mlp_kernel(%arg0: i32, %arg1: memref<8x784xbf16, #tpu.memory_space<vmem>>, %arg2: memref<784x256xbf16, #tpu.memory_space<vmem>>, %arg3: memref<1x256xf32, #tpu.memory_space<vmem>>, %arg4: memref<256x128xbf16, #tpu.memory_space<vmem>>, %arg5: memref<1x128xf32, #tpu.memory_space<vmem>>, %arg6: memref<128x64xbf16, #tpu.memory_space<vmem>>, %arg7: memref<1x64xf32, #tpu.memory_space<vmem>>, %arg8: memref<64x128xbf16, #tpu.memory_space<vmem>>, %arg9: memref<1x128xf32, #tpu.memory_space<vmem>>, %arg10: memref<8x128xf32, #tpu.memory_space<vmem>>) attributes {dimension_semantics = [#tpu.dimension_semantics<parallel>], iteration_bounds = array<i64: 1>, scalar_prefetch = 0 : i64, scratch_operands = 0 : i64, tpu.core_type = #tpu.core_type<tc>, window_params = [{transform_indices = @transform_0, window_bounds = array<i64: 8, 784>}, {pipeline_mode = #tpu.pipeline_mode<synchronous>, transform_indices = @transform_1, window_bounds = array<i64: 784, 256>}, {pipeline_mode = #tpu.pipeline_mode<synchronous>, transform_indices = @transform_2, window_bounds = array<i64: 1, 256>}, {pipeline_mode = #tpu.pipeline_mode<synchronous>, transform_indices = @transform_3, window_bounds = array<i64: 256, 128>}, {pipeline_mode = #tpu.pipeline_mode<synchronous>, transform_indices = @transform_4, window_bounds = array<i64: 1, 128>}, {pipeline_mode = #tpu.pipeline_mode<synchronous>, transform_indices = @transform_5, window_bounds = array<i64: 128, 64>}, {pipeline_mode = #tpu.pipeline_mode<synchronous>, transform_indices = @transform_6, window_bounds = array<i64: 1, 64>}, {pipeline_mode = #tpu.pipeline_mode<synchronous>, transform_indices = @transform_7, window_bounds = array<i64: 64, 128>}, {pipeline_mode = #tpu.pipeline_mode<synchronous>, transform_indices = @transform_8, window_bounds = array<i64: 1, 128>}, {transform_indices = @transform_9, window_bounds = array<i64: 8, 128>}]} {
    %c0 = arith.constant 0 : index
    %c0_0 = arith.constant 0 : index
    %0 = vector.load %arg1[%c0, %c0_0] : memref<8x784xbf16, #tpu.memory_space<vmem>>, vector<8x784xbf16>
    %c0_1 = arith.constant 0 : index
    %c0_2 = arith.constant 0 : index
    %1 = vector.load %arg2[%c0_1, %c0_2] : memref<784x256xbf16, #tpu.memory_space<vmem>>, vector<784x256xbf16>
    %cst = arith.constant dense<0.000000e+00> : vector<8x256xf32>
    %2 = tpu.matmul %0, %1, %cst {dimension_numbers = #tpu.dot_dimension_numbers<[1], [0], [0], [1], [0, 0, 1, 1], [], []>} : vector<8x784xbf16>, vector<784x256xbf16>, vector<8x256xf32> -> vector<8x256xf32>
    %c0_3 = arith.constant 0 : index
    %c0_4 = arith.constant 0 : index
    %3 = vector.load %arg3[%c0_3, %c0_4] : memref<1x256xf32, #tpu.memory_space<vmem>>, vector<1x256xf32>
    %4 = vector.broadcast %3 : vector<1x256xf32> to vector<8x256xf32>
    %5 = arith.addf %2, %4 : vector<8x256xf32>
    %cst_5 = arith.constant 0.000000e+00 : f32
    %6 = vector.broadcast %cst_5 : f32 to vector<8x256xf32>
    %7 = arith.maximumf %5, %6 : vector<8x256xf32>
    %8 = arith.truncf %7 : vector<8x256xf32> to vector<8x256xbf16>
    %c0_6 = arith.constant 0 : index
    %c0_7 = arith.constant 0 : index
    %9 = vector.load %arg4[%c0_6, %c0_7] : memref<256x128xbf16, #tpu.memory_space<vmem>>, vector<256x128xbf16>
    %cst_8 = arith.constant dense<0.000000e+00> : vector<8x128xf32>
    %10 = tpu.matmul %8, %9, %cst_8 {dimension_numbers = #tpu.dot_dimension_numbers<[1], [0], [0], [1], [0, 0, 1, 1], [], []>} : vector<8x256xbf16>, vector<256x128xbf16>, vector<8x128xf32> -> vector<8x128xf32>
    %c0_9 = arith.constant 0 : index
    %c0_10 = arith.constant 0 : index
    %11 = vector.load %arg5[%c0_9, %c0_10] : memref<1x128xf32, #tpu.memory_space<vmem>>, vector<1x128xf32>
    %12 = vector.broadcast %11 : vector<1x128xf32> to vector<8x128xf32>
    %13 = arith.addf %10, %12 : vector<8x128xf32>
    %cst_11 = arith.constant 0.000000e+00 : f32
    %14 = vector.broadcast %cst_11 : f32 to vector<8x128xf32>
    %15 = arith.maximumf %13, %14 : vector<8x128xf32>
    %16 = arith.truncf %15 : vector<8x128xf32> to vector<8x128xbf16>
    %c0_12 = arith.constant 0 : index
    %c0_13 = arith.constant 0 : index
    %17 = vector.load %arg6[%c0_12, %c0_13] : memref<128x64xbf16, #tpu.memory_space<vmem>>, vector<128x64xbf16>
    %cst_14 = arith.constant dense<0.000000e+00> : vector<8x64xf32>
    %18 = tpu.matmul %16, %17, %cst_14 {dimension_numbers = #tpu.dot_dimension_numbers<[1], [0], [0], [1], [0, 0, 1, 1], [], []>} : vector<8x128xbf16>, vector<128x64xbf16>, vector<8x64xf32> -> vector<8x64xf32>
    %c0_15 = arith.constant 0 : index
    %c0_16 = arith.constant 0 : index
    %19 = vector.load %arg7[%c0_15, %c0_16] : memref<1x64xf32, #tpu.memory_space<vmem>>, vector<1x64xf32>
    %20 = vector.broadcast %19 : vector<1x64xf32> to vector<8x64xf32>
    %21 = arith.addf %18, %20 : vector<8x64xf32>
    %cst_17 = arith.constant 0.000000e+00 : f32
    %22 = vector.broadcast %cst_17 : f32 to vector<8x64xf32>
    %23 = arith.maximumf %21, %22 : vector<8x64xf32>
    %24 = arith.truncf %23 : vector<8x64xf32> to vector<8x64xbf16>
    %c0_18 = arith.constant 0 : index
    %c0_19 = arith.constant 0 : index
    %25 = vector.load %arg8[%c0_18, %c0_19] : memref<64x128xbf16, #tpu.memory_space<vmem>>, vector<64x128xbf16>
    %cst_20 = arith.constant dense<0.000000e+00> : vector<8x128xf32>
    %26 = tpu.matmul %24, %25, %cst_20 {dimension_numbers = #tpu.dot_dimension_numbers<[1], [0], [0], [1], [0, 0, 1, 1], [], []>} : vector<8x64xbf16>, vector<64x128xbf16>, vector<8x128xf32> -> vector<8x128xf32>
    %c0_21 = arith.constant 0 : index
    %c0_22 = arith.constant 0 : index
    %27 = vector.load %arg9[%c0_21, %c0_22] : memref<1x128xf32, #tpu.memory_space<vmem>>, vector<1x128xf32>
    %28 = vector.broadcast %27 : vector<1x128xf32> to vector<8x128xf32>
    %29 = arith.addf %26, %28 : vector<8x128xf32>
    %c0_23 = arith.constant 0 : index
    %c0_24 = arith.constant 0 : index
    %30 = vector.load %arg10[%c0_23, %c0_24] : memref<8x128xf32, #tpu.memory_space<vmem>>, vector<8x128xf32>
    tpu.vector_store %arg10[%c0_23, %c0_24], %29 {strides = array<i32>} : memref<8x128xf32, #tpu.memory_space<vmem>>, vector<8x128xf32>,
    return
  }
  func.func @transform_0(%arg0: i32) -> (i32, i32) {
    %c0_i32 = arith.constant 0 : i32
    %c0_i32_0 = arith.constant 0 : i32
    return %arg0, %c0_i32 : i32, i32
  }
  func.func @transform_1(%arg0: i32) -> (i32, i32) {
    %c0_i32 = arith.constant 0 : i32
    %c0_i32_0 = arith.constant 0 : i32
    %c0_i32_1 = arith.constant 0 : i32
    return %c0_i32, %c0_i32_0 : i32, i32
  }
  func.func @transform_2(%arg0: i32) -> (i32, i32) {
    %c0_i32 = arith.constant 0 : i32
    %c0_i32_0 = arith.constant 0 : i32
    %c0_i32_1 = arith.constant 0 : i32
    return %c0_i32, %c0_i32_0 : i32, i32
  }
  func.func @transform_3(%arg0: i32) -> (i32, i32) {
    %c0_i32 = arith.constant 0 : i32
    %c0_i32_0 = arith.constant 0 : i32
    %c0_i32_1 = arith.constant 0 : i32
    return %c0_i32, %c0_i32_0 : i32, i32
  }
  func.func @transform_4(%arg0: i32) -> (i32, i32) {
    %c0_i32 = arith.constant 0 : i32
    %c0_i32_0 = arith.constant 0 : i32
    %c0_i32_1 = arith.constant 0 : i32
    return %c0_i32, %c0_i32_0 : i32, i32
  }
  func.func @transform_5(%arg0: i32) -> (i32, i32) {
    %c0_i32 = arith.constant 0 : i32
    %c0_i32_0 = arith.constant 0 : i32
    %c0_i32_1 = arith.constant 0 : i32
    return %c0_i32, %c0_i32_0 : i32, i32
  }
  func.func @transform_6(%arg0: i32) -> (i32, i32) {
    %c0_i32 = arith.constant 0 : i32
    %c0_i32_0 = arith.constant 0 : i32
    %c0_i32_1 = arith.constant 0 : i32
    return %c0_i32, %c0_i32_0 : i32, i32
  }
  func.func @transform_7(%arg0: i32) -> (i32, i32) {
    %c0_i32 = arith.constant 0 : i32
    %c0_i32_0 = arith.constant 0 : i32
    %c0_i32_1 = arith.constant 0 : i32
    return %c0_i32, %c0_i32_0 : i32, i32
  }
  func.func @transform_8(%arg0: i32) -> (i32, i32) {
    %c0_i32 = arith.constant 0 : i32
    %c0_i32_0 = arith.constant 0 : i32
    %c0_i32_1 = arith.constant 0 : i32
    return %c0_i32, %c0_i32_0 : i32, i32
  }
  func.func @transform_9(%arg0: i32) -> (i32, i32) {
    %c0_i32 = arith.constant 0 : i32
    %c0_i32_0 = arith.constant 0 : i32
    return %arg0, %c0_i32 : i32, i32
  }
}

</mosaic_0001>

<llo_original>
// kernel: tpu_custom_call.1
$region0: #{tpu_custom_call.1}
  #allocation0 [shape = 'u32[]', space=smem, size = 0x4, offset = 0x4, fixed_abs, tag = 'smem constant byte address 0x4 - core index']
  #allocation1 [shape = 'u32[144,128]{1,0:T(1,128)}', space=vmem, size = 0x12000, scoped, tag = 'internal scratch']
  %s0 = inlined_call_operand.vmem [shape: bf16[8,784], index: 0, kind: input, shape index: {}]
  %s1 = inlined_call_operand.hbm [shape: bf16[784,256], index: 1, kind: input, shape index: {}]
  %s2 = inlined_call_operand.vmem [shape: f32[1,256], index: 2, kind: input, shape index: {}]
  %s3 = inlined_call_operand.hbm [shape: bf16[256,128], index: 3, kind: input, shape index: {}]
  %s4 = inlined_call_operand.vmem [shape: f32[1,128], index: 4, kind: input, shape index: {}]
  %s5 = inlined_call_operand.vmem [shape: bf16[128,64], index: 5, kind: input, shape index: {}]
  %s6 = inlined_call_operand.vmem [shape: f32[1,64], index: 6, kind: input, shape index: {}]
  %s7 = inlined_call_operand.vmem [shape: bf16[64,128], index: 7, kind: input, shape index: {}]
  %s8 = inlined_call_operand.vmem [shape: f32[1,128], index: 8, kind: input, shape index: {}]
  %s9 = inlined_call_operand.hbm [shape: f32[8,128], index: 9, kind: output, shape index: {}]
  %s10 = sld [smem:[#allocation0]]
  $region54: #{tpu_custom_call.1} parent=0
    _
  %s12 = ssub.s32 1, %s10
  %s13 = scalar_select 0, %s12, %s10
  $region1: #{tpu_custom_call.1} parent=0
    #allocation2 [shape = 'u8[401408]{0}', space=vmem, size = 0x62000, scoped, tag = 'input window, operand 1, single buffered']
    #allocation3 [shape = 's32[1]{0}', space=sflag, size = 0x4, scoped, tag = 'scoped memory for tpu_custom_call.1']
    #allocation4 [shape = 's32[1]{0}', space=sflag, size = 0x4, scoped, tag = 'scoped memory for tpu_custom_call.1']
    #allocation5 [shape = 'u8[65536]{0}', space=vmem, size = 0x10000, scoped, tag = 'input window, operand 3, single buffered']
    #allocation6 [shape = 's32[1]{0}', space=sflag, size = 0x4, scoped, tag = 'scoped memory for tpu_custom_call.1']
    #allocation7 [shape = 'u8[4096]{0}', space=vmem, size = 0x1000, scoped, tag = 'output window, operand 0, single buffered']
    %14 = vsyncpa [#allocation3], 0
    %15 = vsyncpa [#allocation6], 0
    %16 = vsyncpa [#allocation4], 0
    // Predicated region
    $region2: #{tpu_custom_call.1} parent=1 // pred_check
      _
    $region3: #{tpu_custom_call.1} parent=1 // pred_check_branch
      %18 = sbr.rel (0) target = $region5
    $region4: #{tpu_custom_call.1} parent=1 // pred_region
      _
    $region5: #{tpu_custom_call.1} parent=1 // pred_fallthru
      _
    // Predicated region
    $region6: #{tpu_custom_call.1} parent=1 // pred_check
      _
    $region7: #{tpu_custom_call.1} parent=1 // pred_check_branch
      %20 = sbr.rel (0) target = $region9
    $region8: #{tpu_custom_call.1} parent=1 // pred_region
      %s22 = ssub.s32 12544, 12544
      %23 = vsyncadd [#allocation3], %s22
      %s24 = sshll.u32 [#allocation2], 4
      %s25 = int_to_ptr.vmem [resolvable:$true] %s24
      %30 = dma.hbm_to_vmem [thread:$0]  %s1, 12544, %s25, [#allocation3], 128, 128, 8
    $region9: #{tpu_custom_call.1} parent=1 // pred_fallthru
      _
    // Predicated region
    $region10: #{tpu_custom_call.1} parent=1 // pred_check
      _
    $region11: #{tpu_custom_call.1} parent=1 // pred_check_branch
      %32 = sbr.rel (0) target = $region13
    $region12: #{tpu_custom_call.1} parent=1 // pred_region
      _
    $region13: #{tpu_custom_call.1} parent=1 // pred_fallthru
      _
    // Predicated region
    $region14: #{tpu_custom_call.1} parent=1 // pred_check
      _
    $region15: #{tpu_custom_call.1} parent=1 // pred_check_branch
      %34 = sbr.rel (0) target = $region17
    $region16: #{tpu_custom_call.1} parent=1 // pred_region
      %s36 = ssub.s32 2048, 2048
      %37 = vsyncadd [#allocation6], %s36
      %s38 = sshll.u32 [#allocation5], 4
      %s39 = int_to_ptr.vmem [resolvable:$true] %s38
      %44 = dma.hbm_to_vmem [thread:$0]  %s3, 2048, %s39, [#allocation6], 64, 64, 4
    $region17: #{tpu_custom_call.1} parent=1 // pred_fallthru
      _
    // Predicated region
    $region18: #{tpu_custom_call.1} parent=1 // pred_check
      _
    $region19: #{tpu_custom_call.1} parent=1 // pred_check_branch
      %46 = sbr.rel (0) target = $region21
    $region20: #{tpu_custom_call.1} parent=1 // pred_region
      _
    $region21: #{tpu_custom_call.1} parent=1 // pred_fallthru
      _
    // Predicated region
    $region22: #{tpu_custom_call.1} parent=1 // pred_check
      _
    $region23: #{tpu_custom_call.1} parent=1 // pred_check_branch
      %48 = sbr.rel (0) target = $region25
    $region24: #{tpu_custom_call.1} parent=1 // pred_region
      _
    $region25: #{tpu_custom_call.1} parent=1 // pred_fallthru
      _
    // Predicated region
    $region26: #{tpu_custom_call.1} parent=1 // pred_check
      _
    $region27: #{tpu_custom_call.1} parent=1 // pred_check_branch
      %50 = sbr.rel (0) target = $region29
    $region28: #{tpu_custom_call.1} parent=1 // pred_region
      _
    $region29: #{tpu_custom_call.1} parent=1 // pred_fallthru
      _
    // Predicated region
    $region30: #{tpu_custom_call.1} parent=1 // pred_check
      _
    $region31: #{tpu_custom_call.1} parent=1 // pred_check_branch
      %52 = sbr.rel (0) target = $region33
    $region32: #{tpu_custom_call.1} parent=1 // pred_region
      _
    $region33: #{tpu_custom_call.1} parent=1 // pred_fallthru
      _
    // Predicated region
    $region34: #{tpu_custom_call.1} parent=1 // pred_check
      _
    $region35: #{tpu_custom_call.1} parent=1 // pred_check_branch
      %54 = sbr.rel (0) target = $region37
    $region36: #{tpu_custom_call.1} parent=1 // pred_region
      _
    $region37: #{tpu_custom_call.1} parent=1 // pred_fallthru
      _
    // Predicated region
    $region38: #{tpu_custom_call.1} parent=1 // pred_check
      _
    $region39: #{tpu_custom_call.1} parent=1 // pred_check_branch
      %56 = sbr.rel (0) target = $region41
    $region40: #{tpu_custom_call.1} parent=1 // pred_region
      %57 = dma.done [#allocation3], 12544
    $region41: #{tpu_custom_call.1} parent=1 // pred_fallthru
      _
    // Predicated region
    $region42: #{tpu_custom_call.1} parent=1 // pred_check
      _
    $region43: #{tpu_custom_call.1} parent=1 // pred_check_branch
      %59 = sbr.rel (0) target = $region45
    $region44: #{tpu_custom_call.1} parent=1 // pred_region
      %60 = dma.done [#allocation6], 2048
    $region45: #{tpu_custom_call.1} parent=1 // pred_fallthru
      _
    %v62 = vld [vmem:[%s0] sm:$0xff]
    %v63 = vld [vmem:[%s0 + $0x8] sm:$0xff]
    %v64 = vld [vmem:[%s0 + $0x10] sm:$0xff]
    %v65 = vld [vmem:[%s0 + $0x18] sm:$0xf]
    %v66 = vld [vmem:[#allocation2] sm:$0xff]
    %v67 = vld [vmem:[#allocation2 + $0x8] sm:$0xff]
    %v68 = vld [vmem:[#allocation2 + $0x10] sm:$0xff]
    %v69 = vld [vmem:[#allocation2 + $0x18] sm:$0xff]
    %v70 = vld [vmem:[#allocation2 + $0x20] sm:$0xff]
    %v71 = vld [vmem:[#allocation2 + $0x28] sm:$0xff]
    %v72 = vld [vmem:[#allocation2 + $0x30] sm:$0xff]
    %v73 = vld [vmem:[#allocation2 + $0x38] sm:$0xff]
    %v74 = vld [vmem:[#allocation2 + $0x40] sm:$0xff]
    %v75 = vld [vmem:[#allocation2 + $0x48] sm:$0xff]
    %v76 = vld [vmem:[#allocation2 + $0x50] sm:$0xff]
    %v77 = vld [vmem:[#allocation2 + $0x58] sm:$0xff]
    %v78 = vld [vmem:[#allocation2 + $0x60] sm:$0xff]
    %v79 = vld [vmem:[#allocation2 + $0x68] sm:$0xff]
    %v80 = vld [vmem:[#allocation2 + $0x70] sm:$0xff]
    %v81 = vld [vmem:[#allocation2 + $0x78] sm:$0xff]
    %v82 = vld [vmem:[#allocation2 + $0x80] sm:$0xff]
    %v83 = vld [vmem:[#allocation2 + $0x88] sm:$0xff]
    %v84 = vld [vmem:[#allocation2 + $0x90] sm:$0xff]
    %v85 = vld [vmem:[#allocation2 + $0x98] sm:$0xff]
    %v86 = vld [vmem:[#allocation2 + $0xa0] sm:$0xff]
    %v87 = vld [vmem:[#allocation2 + $0xa8] sm:$0xff]
    %v88 = vld [vmem:[#allocation2 + $0xb0] sm:$0xff]
    %v89 = vld [vmem:[#allocation2 + $0xb8] sm:$0xff]
    %v90 = vld [vmem:[#allocation2 + $0xc0] sm:$0xff]
    %v91 = vld [vmem:[#allocation2 + $0xc8] sm:$0xff]
    %v92 = vld [vmem:[#allocation2 + $0xd0] sm:$0xff]
    %v93 = vld [vmem:[#allocation2 + $0xd8] sm:$0xff]
    %v94 = vld [vmem:[#allocation2 + $0xe0] sm:$0xff]
    %v95 = vld [vmem:[#allocation2 + $0xe8] sm:$0xff]
    %v96 = vld [vmem:[#allocation2 + $0xf0] sm:$0xff]
    %v97 = vld [vmem:[#allocation2 + $0xf8] sm:$0xff]
    %v98 = vld [vmem:[#allocation2 + $0x100] sm:$0xff]
    %v99 = vld [vmem:[#allocation2 + $0x108] sm:$0xff]
    %v100 = vld [vmem:[#allocation2 + $0x110] sm:$0xff]
    %v101 = vld [vmem:[#allocation2 + $0x118] sm:$0xff]
    %v102 = vld [vmem:[#allocation2 + $0x120] sm:$0xff]
    %v103 = vld [vmem:[#allocation2 + $0x128] sm:$0xff]
    %v104 = vld [vmem:[#allocation2 + $0x130] sm:$0xff]
    %v105 = vld [vmem:[#allocation2 + $0x138] sm:$0xff]
    %v106 = vld [vmem:[#allocation2 + $0x140] sm:$0xff]
    %v107 = vld [vmem:[#allocation2 + $0x148] sm:$0xff]
    %v108 = vld [vmem:[#allocation2 + $0x150] sm:$0xff]
    %v109 = vld [vmem:[#allocation2 + $0x158] sm:$0xff]
    %v110 = vld [vmem:[#allocation2 + $0x160] sm:$0xff]
    %v111 = vld [vmem:[#allocation2 + $0x168] sm:$0xff]
    %v112 = vld [vmem:[#allocation2 + $0x170] sm:$0xff]
    %v113 = vld [vmem:[#allocation2 + $0x178] sm:$0xff]
    %v114 = vld [vmem:[#allocation2 + $0x180] sm:$0xff]
    %v115 = vld [vmem:[#allocation2 + $0x188] sm:$0xff]
    %v116 = vld [vmem:[#allocation2 + $0x190] sm:$0xff]
    %v117 = vld [vmem:[#allocation2 + $0x198] sm:$0xff]
    %v118 = vld [vmem:[#allocation2 + $0x1a0] sm:$0xff]
    %v119 = vld [vmem:[#allocation2 + $0x1a8] sm:$0xff]
    %v120 = vld [vmem:[#allocation2 + $0x1b0] sm:$0xff]
    %v121 = vld [vmem:[#allocation2 + $0x1b8] sm:$0xff]
    %v122 = vld [vmem:[#allocation2 + $0x1c0] sm:$0xff]
    %v123 = vld [vmem:[#allocation2 + $0x1c8] sm:$0xff]
    %v124 = vld [vmem:[#allocation2 + $0x1d0] sm:$0xff]
    %v125 = vld [vmem:[#allocation2 + $0x1d8] sm:$0xff]
    %v126 = vld [vmem:[#allocation2 + $0x1e0] sm:$0xff]
    %v127 = vld [vmem:[#allocation2 + $0x1e8] sm:$0xff]
    %v128 = vld [vmem:[#allocation2 + $0x1f0] sm:$0xff]
    %v129 = vld [vmem:[#allocation2 + $0x1f8] sm:$0xff]
    %v130 = vld [vmem:[#allocation2 + $0x200] sm:$0xff]
    %v131 = vld [vmem:[#allocation2 + $0x208] sm:$0xff]
    %v132 = vld [vmem:[#allocation2 + $0x210] sm:$0xff]
    %v133 = vld [vmem:[#allocation2 + $0x218] sm:$0xff]
    %v134 = vld [vmem:[#allocation2 + $0x220] sm:$0xff]
    %v135 = vld [vmem:[#allocation2 + $0x228] sm:$0xff]
    %v136 = vld [vmem:[#allocation2 + $0x230] sm:$0xff]
    %v137 = vld [vmem:[#allocation2 + $0x238] sm:$0xff]
    %v138 = vld [vmem:[#allocation2 + $0x240] sm:$0xff]
    %v139 = vld [vmem:[#allocation2 + $0x248] sm:$0xff]
    %v140 = vld [vmem:[#allocation2 + $0x250] sm:$0xff]
    %v141 = vld [vmem:[#allocation2 + $0x258] sm:$0xff]
    %v142 = vld [vmem:[#allocation2 + $0x260] sm:$0xff]
    %v143 = vld [vmem:[#allocation2 + $0x268] sm:$0xff]
    %v144 = vld [vmem:[#allocation2 + $0x270] sm:$0xff]
    %v145 = vld [vmem:[#allocation2 + $0x278] sm:$0xff]
    %v146 = vld [vmem:[#allocation2 + $0x280] sm:$0xff]
    %v147 = vld [vmem:[#allocation2 + $0x288] sm:$0xff]
    %v148 = vld [vmem:[#allocation2 + $0x290] sm:$0xff]
    %v149 = vld [vmem:[#allocation2 + $0x298] sm:$0xff]
    %v150 = vld [vmem:[#allocation2 + $0x2a0] sm:$0xff]
    %v151 = vld [vmem:[#allocation2 + $0x2a8] sm:$0xff]
    %v152 = vld [vmem:[#allocation2 + $0x2b0] sm:$0xff]
    %v153 = vld [vmem:[#allocation2 + $0x2b8] sm:$0xff]
    %v154 = vld [vmem:[#allocation2 + $0x2c0] sm:$0xff]
    %v155 = vld [vmem:[#allocation2 + $0x2c8] sm:$0xff]
    %v156 = vld [vmem:[#allocation2 + $0x2d0] sm:$0xff]
    %v157 = vld [vmem:[#allocation2 + $0x2d8] sm:$0xff]
    %v158 = vld [vmem:[#allocation2 + $0x2e0] sm:$0xff]
    %v159 = vld [vmem:[#allocation2 + $0x2e8] sm:$0xff]
    %v160 = vld [vmem:[#allocation2 + $0x2f0] sm:$0xff]
    %v161 = vld [vmem:[#allocation2 + $0x2f8] sm:$0xff]
    %v162 = vld [vmem:[#allocation2 + $0x300] sm:$0xff]
    %v163 = vld [vmem:[#allocation2 + $0x308] sm:$0xff]
    %v164 = vld [vmem:[%s2] sm:$0x3]
    %v166 = vlaneseq
    %v167 = vshrl.u32 %v166, 7
    %v168 = vsub.s32 0, %v167
    %v169 = vrot.slane %v164, %v168
    %v170 = vlaneseq
    %v171 = vshrl.u32 %v170, 7
    %v172 = vsub.s32 1, %v171
    %v173 = vrot.slane %v164, %v172
    %v180 = vunpack.c.l.b16 %v62
    %v181 = vunpack.c.h.b16 %v62
    %v182 = vunpack.c.l.b16 %v63
    %v183 = vunpack.c.h.b16 %v63
    %v184 = vunpack.c.l.b16 %v64
    %v185 = vunpack.c.h.b16 %v64
    %v186 = vunpack.c.l.b16 %v65
    %v187 = vpack.c.b16 %v180, %v180
    %v188 = vpack.c.b16 %v181, %v181
    %v189 = vpack.c.b16 %v182, %v182
    %v190 = vpack.c.b16 %v183, %v183
    %v191 = vpack.c.b16 %v184, %v184
    %v192 = vpack.c.b16 %v185, %v185
    %v193 = vpack.c.b16 %v186, %v186
    %v298 = vunpack.c.l.b16 %v66
    %v299 = vunpack.c.h.b16 %v66
    %v300 = vunpack.c.l.b16 %v67
    %v301 = vunpack.c.h.b16 %v67
    %v302 = vunpack.c.l.b16 %v68
    %v303 = vunpack.c.h.b16 %v68
    %v304 = vunpack.c.l.b16 %v69
    %v305 = vunpack.c.h.b16 %v69
    %v306 = vunpack.c.l.b16 %v70
    %v307 = vunpack.c.h.b16 %v70
    %v308 = vunpack.c.l.b16 %v71
    %v309 = vunpack.c.h.b16 %v71
    %v310 = vunpack.c.l.b16 %v72
    %v311 = vunpack.c.h.b16 %v72
    %v312 = vunpack.c.l.b16 %v73
    %v313 = vunpack.c.h.b16 %v73
    %v314 = vunpack.c.l.b16 %v74
    %v315 = vunpack.c.h.b16 %v74
    %v316 = vunpack.c.l.b16 %v75
    %v317 = vunpack.c.h.b16 %v75
    %v318 = vunpack.c.l.b16 %v76
    %v319 = vunpack.c.h.b16 %v76
    %v320 = vunpack.c.l.b16 %v77
    %v321 = vunpack.c.h.b16 %v77
    %v322 = vunpack.c.l.b16 %v78
    %v323 = vunpack.c.h.b16 %v78
    %v324 = vunpack.c.l.b16 %v79
    %v325 = vunpack.c.h.b16 %v79
    %v326 = vunpack.c.l.b16 %v80
    %v327 = vunpack.c.h.b16 %v80
    %v328 = vunpack.c.l.b16 %v81
    %v329 = vunpack.c.h.b16 %v81
    %v330 = vunpack.c.l.b16 %v82
    %v331 = vunpack.c.h.b16 %v82
    %v332 = vunpack.c.l.b16 %v83
    %v333 = vunpack.c.h.b16 %v83
    %v334 = vunpack.c.l.b16 %v84
    %v335 = vunpack.c.h.b16 %v84
    %v336 = vunpack.c.l.b16 %v85
    %v337 = vunpack.c.h.b16 %v85
    %v338 = vunpack.c.l.b16 %v86
    %v339 = vunpack.c.h.b16 %v86
    %v340 = vunpack.c.l.b16 %v87
    %v341 = vunpack.c.h.b16 %v87
    %v342 = vunpack.c.l.b16 %v88
    %v343 = vunpack.c.h.b16 %v88
    %v344 = vunpack.c.l.b16 %v89
    %v345 = vunpack.c.h.b16 %v89
    %v346 = vunpack.c.l.b16 %v90
    %v347 = vunpack.c.h.b16 %v90
    %v348 = vunpack.c.l.b16 %v91
    %v349 = vunpack.c.h.b16 %v91
    %v350 = vunpack.c.l.b16 %v92
    %v351 = vunpack.c.h.b16 %v92
    %v352 = vunpack.c.l.b16 %v93
    %v353 = vunpack.c.h.b16 %v93
    %v354 = vunpack.c.l.b16 %v94
    %v355 = vunpack.c.h.b16 %v94
    %v356 = vunpack.c.l.b16 %v95
    %v357 = vunpack.c.h.b16 %v95
    %v358 = vunpack.c.l.b16 %v96
    %v359 = vunpack.c.h.b16 %v96
    %v360 = vunpack.c.l.b16 %v97
    %v361 = vunpack.c.h.b16 %v97
    %v362 = vunpack.c.l.b16 %v98
    %v363 = vunpack.c.h.b16 %v98
    %v364 = vunpack.c.l.b16 %v99
    %v365 = vunpack.c.h.b16 %v99
    %v366 = vunpack.c.l.b16 %v100
    %v367 = vunpack.c.h.b16 %v100
    %v368 = vunpack.c.l.b16 %v101
    %v369 = vunpack.c.h.b16 %v101
    %v370 = vunpack.c.l.b16 %v102
    %v371 = vunpack.c.h.b16 %v102
    %v372 = vunpack.c.l.b16 %v103
    %v373 = vunpack.c.h.b16 %v103
    %v374 = vunpack.c.l.b16 %v104
    %v375 = vunpack.c.h.b16 %v104
    %v376 = vunpack.c.l.b16 %v105
    %v377 = vunpack.c.h.b16 %v105
    %v378 = vunpack.c.l.b16 %v106
    %v379 = vunpack.c.h.b16 %v106
    %v380 = vunpack.c.l.b16 %v107
    %v381 = vunpack.c.h.b16 %v107
    %v382 = vunpack.c.l.b16 %v108
    %v383 = vunpack.c.h.b16 %v108
    %v384 = vunpack.c.l.b16 %v109
    %v385 = vunpack.c.h.b16 %v109
    %v386 = vunpack.c.l.b16 %v110
    %v387 = vunpack.c.h.b16 %v110
    %v388 = vunpack.c.l.b16 %v111
    %v389 = vunpack.c.h.b16 %v111
    %v390 = vunpack.c.l.b16 %v112
    %v391 = vunpack.c.h.b16 %v112
    %v392 = vunpack.c.l.b16 %v113
    %v393 = vunpack.c.h.b16 %v113
    %v394 = vunpack.c.l.b16 %v114
    %v395 = vunpack.c.h.b16 %v114
    %v396 = vunpack.c.l.b16 %v115
    %v397 = vunpack.c.h.b16 %v115
    %v398 = vunpack.c.l.b16 %v116
    %v399 = vunpack.c.h.b16 %v116
    %v400 = vunpack.c.l.b16 %v117
    %v401 = vunpack.c.h.b16 %v117
    %v402 = vunpack.c.l.b16 %v118
    %v403 = vunpack.c.h.b16 %v118
    %v404 = vunpack.c.l.b16 %v119
    %v405 = vunpack.c.h.b16 %v119
    %v406 = vunpack.c.l.b16 %v120
    %v407 = vunpack.c.h.b16 %v120
    %v408 = vunpack.c.l.b16 %v121
    %v409 = vunpack.c.h.b16 %v121
    %v410 = vunpack.c.l.b16 %v122
    %v411 = vunpack.c.h.b16 %v122
    %v412 = vunpack.c.l.b16 %v123
    %v413 = vunpack.c.h.b16 %v123
    %v414 = vunpack.c.l.b16 %v124
    %v415 = vunpack.c.h.b16 %v124
    %v416 = vunpack.c.l.b16 %v125
    %v417 = vunpack.c.h.b16 %v125
    %v418 = vunpack.c.l.b16 %v126
    %v419 = vunpack.c.h.b16 %v126
    %v420 = vunpack.c.l.b16 %v127
    %v421 = vunpack.c.h.b16 %v127
    %v422 = vunpack.c.l.b16 %v128
    %v423 = vunpack.c.h.b16 %v128
    %v424 = vunpack.c.l.b16 %v129
    %v425 = vunpack.c.h.b16 %v129
    %v426 = vunpack.c.l.b16 %v130
    %v427 = vunpack.c.h.b16 %v130
    %v428 = vunpack.c.l.b16 %v131
    %v429 = vunpack.c.h.b16 %v131
    %v430 = vunpack.c.l.b16 %v132
    %v431 = vunpack.c.h.b16 %v132
    %v432 = vunpack.c.l.b16 %v133
    %v433 = vunpack.c.h.b16 %v133
    %v434 = vunpack.c.l.b16 %v134
    %v435 = vunpack.c.h.b16 %v134
    %v436 = vunpack.c.l.b16 %v135
    %v437 = vunpack.c.h.b16 %v135
    %v438 = vunpack.c.l.b16 %v136
    %v439 = vunpack.c.h.b16 %v136
    %v440 = vunpack.c.l.b16 %v137
    %v441 = vunpack.c.h.b16 %v137
    %v442 = vunpack.c.l.b16 %v138
    %v443 = vunpack.c.h.b16 %v138
    %v444 = vunpack.c.l.b16 %v139
    %v445 = vunpack.c.h.b16 %v139
    %v446 = vunpack.c.l.b16 %v140
    %v447 = vunpack.c.h.b16 %v140
    %v448 = vunpack.c.l.b16 %v141
    %v449 = vunpack.c.h.b16 %v141
    %v450 = vunpack.c.l.b16 %v142
    %v451 = vunpack.c.h.b16 %v142
    %v452 = vunpack.c.l.b16 %v143
    %v453 = vunpack.c.h.b16 %v143
    %v454 = vunpack.c.l.b16 %v144
    %v455 = vunpack.c.h.b16 %v144
    %v456 = vunpack.c.l.b16 %v145
    %v457 = vunpack.c.h.b16 %v145
    %v458 = vunpack.c.l.b16 %v146
    %v459 = vunpack.c.h.b16 %v146
    %v460 = vunpack.c.l.b16 %v147
    %v461 = vunpack.c.h.b16 %v147
    %v462 = vunpack.c.l.b16 %v148
    %v463 = vunpack.c.h.b16 %v148
    %v464 = vunpack.c.l.b16 %v149
    %v465 = vunpack.c.h.b16 %v149
    %v466 = vunpack.c.l.b16 %v150
    %v467 = vunpack.c.h.b16 %v150
    %v468 = vunpack.c.l.b16 %v151
    %v469 = vunpack.c.h.b16 %v151
    %v470 = vunpack.c.l.b16 %v152
    %v471 = vunpack.c.h.b16 %v152
    %v472 = vunpack.c.l.b16 %v153
    %v473 = vunpack.c.h.b16 %v153
    %v474 = vunpack.c.l.b16 %v154
    %v475 = vunpack.c.h.b16 %v154
    %v476 = vunpack.c.l.b16 %v155
    %v477 = vunpack.c.h.b16 %v155
    %v478 = vunpack.c.l.b16 %v156
    %v479 = vunpack.c.h.b16 %v156
    %v480 = vunpack.c.l.b16 %v157
    %v481 = vunpack.c.h.b16 %v157
    %v482 = vunpack.c.l.b16 %v158
    %v483 = vunpack.c.h.b16 %v158
    %v484 = vunpack.c.l.b16 %v159
    %v485 = vunpack.c.h.b16 %v159
    %v486 = vunpack.c.l.b16 %v160
    %v487 = vunpack.c.h.b16 %v160
    %v488 = vunpack.c.l.b16 %v161
    %v489 = vunpack.c.h.b16 %v161
    %v490 = vunpack.c.l.b16 %v162
    %v491 = vunpack.c.h.b16 %v162
    %v492 = vunpack.c.l.b16 %v163
    %v493 = vunpack.c.h.b16 %v163
    %v494 = vpack.c.b16 %v300, %v298
    %v495 = vpack.c.b16 %v301, %v299
    %v496 = vpack.c.b16 %v304, %v302
    %v497 = vpack.c.b16 %v305, %v303
    %v498 = vpack.c.b16 %v308, %v306
    %v499 = vpack.c.b16 %v309, %v307
    %v500 = vpack.c.b16 %v312, %v310
    %v501 = vpack.c.b16 %v313, %v311
    %v502 = vpack.c.b16 %v316, %v314
    %v503 = vpack.c.b16 %v317, %v315
    %v504 = vpack.c.b16 %v320, %v318
    %v505 = vpack.c.b16 %v321, %v319
    %v506 = vpack.c.b16 %v324, %v322
    %v507 = vpack.c.b16 %v325, %v323
    %v508 = vpack.c.b16 %v328, %v326
    %v509 = vpack.c.b16 %v329, %v327
    %v510 = vpack.c.b16 %v332, %v330
    %v511 = vpack.c.b16 %v333, %v331
    %v512 = vpack.c.b16 %v336, %v334
    %v513 = vpack.c.b16 %v337, %v335
    %v514 = vpack.c.b16 %v340, %v338
    %v515 = vpack.c.b16 %v341, %v339
    %v516 = vpack.c.b16 %v344, %v342
    %v517 = vpack.c.b16 %v345, %v343
    %v518 = vpack.c.b16 %v348, %v346
    %v519 = vpack.c.b16 %v349, %v347
    %v520 = vpack.c.b16 %v352, %v350
    %v521 = vpack.c.b16 %v353, %v351
    %v522 = vpack.c.b16 %v356, %v354
    %v523 = vpack.c.b16 %v357, %v355
    %v524 = vpack.c.b16 %v360, %v358
    %v525 = vpack.c.b16 %v361, %v359
    %v526 = vpack.c.b16 %v364, %v362
    %v527 = vpack.c.b16 %v365, %v363
    %v528 = vpack.c.b16 %v368, %v366
    %v529 = vpack.c.b16 %v369, %v367
    %v530 = vpack.c.b16 %v372, %v370
    %v531 = vpack.c.b16 %v373, %v371
    %v532 = vpack.c.b16 %v376, %v374
    %v533 = vpack.c.b16 %v377, %v375
    %v534 = vpack.c.b16 %v380, %v378
    %v535 = vpack.c.b16 %v381, %v379
    %v536 = vpack.c.b16 %v384, %v382
    %v537 = vpack.c.b16 %v385, %v383
    %v538 = vpack.c.b16 %v388, %v386
    %v539 = vpack.c.b16 %v389, %v387
    %v540 = vpack.c.b16 %v392, %v390
    %v541 = vpack.c.b16 %v393, %v391
    %v542 = vpack.c.b16 %v396, %v394
    %v543 = vpack.c.b16 %v397, %v395
    %v544 = vpack.c.b16 %v400, %v398
    %v545 = vpack.c.b16 %v401, %v399
    %v546 = vpack.c.b16 %v404, %v402
    %v547 = vpack.c.b16 %v405, %v403
    %v548 = vpack.c.b16 %v408, %v406
    %v549 = vpack.c.b16 %v409, %v407
    %v550 = vpack.c.b16 %v412, %v410
    %v551 = vpack.c.b16 %v413, %v411
    %v552 = vpack.c.b16 %v416, %v414
    %v553 = vpack.c.b16 %v417, %v415
    %v554 = vpack.c.b16 %v420, %v418
    %v555 = vpack.c.b16 %v421, %v419
    %v556 = vpack.c.b16 %v424, %v422
    %v557 = vpack.c.b16 %v425, %v423
    %v558 = vpack.c.b16 %v428, %v426
    %v559 = vpack.c.b16 %v429, %v427
    %v560 = vpack.c.b16 %v432, %v430
    %v561 = vpack.c.b16 %v433, %v431
    %v562 = vpack.c.b16 %v436, %v434
    %v563 = vpack.c.b16 %v437, %v435
    %v564 = vpack.c.b16 %v440, %v438
    %v565 = vpack.c.b16 %v441, %v439
    %v566 = vpack.c.b16 %v444, %v442
    %v567 = vpack.c.b16 %v445, %v443
    %v568 = vpack.c.b16 %v448, %v446
    %v569 = vpack.c.b16 %v449, %v447
    %v570 = vpack.c.b16 %v452, %v450
    %v571 = vpack.c.b16 %v453, %v451
    %v572 = vpack.c.b16 %v456, %v454
    %v573 = vpack.c.b16 %v457, %v455
    %v574 = vpack.c.b16 %v460, %v458
    %v575 = vpack.c.b16 %v461, %v459
    %v576 = vpack.c.b16 %v464, %v462
    %v577 = vpack.c.b16 %v465, %v463
    %v578 = vpack.c.b16 %v468, %v466
    %v579 = vpack.c.b16 %v469, %v467
    %v580 = vpack.c.b16 %v472, %v470
    %v581 = vpack.c.b16 %v473, %v471
    %v582 = vpack.c.b16 %v476, %v474
    %v583 = vpack.c.b16 %v477, %v475
    %v584 = vpack.c.b16 %v480, %v478
    %v585 = vpack.c.b16 %v481, %v479
    %v586 = vpack.c.b16 %v484, %v482
    %v587 = vpack.c.b16 %v485, %v483
    %v588 = vpack.c.b16 %v488, %v486
    %v589 = vpack.c.b16 %v489, %v487
    %v590 = vpack.c.b16 %v492, %v490
    %v591 = vpack.c.b16 %v493, %v491
    %vm690 = vcmask 130048
    %v692 = vsel %vm690, %v193, 0
    %694 = vmatprep.subr.bf16.mxu0 %v495
    %695 = vmatpush1.bf16.msra.mxu0 %v494
    %696 = vmatprep.subr.bf16.mxu0 %v497
    %697 = vmatpush1.bf16.msra.mxu0 %v496
    %698 = vmatprep.subr.bf16.mxu0 %v499
    %699 = vmatpush1.bf16.msra.mxu0 %v498
    %700 = vmatprep.subr.bf16.mxu0 %v501
    %701 = vmatpush1.bf16.msra.mxu0 %v500
    %702 = vmatprep.subr.bf16.mxu0 %v503
    %703 = vmatpush1.bf16.msra.mxu0 %v502
    %704 = vmatprep.subr.bf16.mxu0 %v505
    %705 = vmatpush1.bf16.msra.mxu0 %v504
    %706 = vmatprep.subr.bf16.mxu0 %v507
    %707 = vmatpush1.bf16.msra.mxu0 %v506
    %708 = vmatprep.subr.bf16.mxu0 %v509
    %709 = vmatpush1.bf16.msra.mxu0 %v508
    %710 = vmatprep.subr.bf16.mxu0 %v511
    %711 = vmatpush1.bf16.msra.mxu0 %v510
    %712 = vmatprep.subr.bf16.mxu0 %v513
    %713 = vmatpush1.bf16.msra.mxu0 %v512
    %714 = vmatprep.subr.bf16.mxu0 %v515
    %715 = vmatpush1.bf16.msra.mxu0 %v514
    %716 = vmatprep.subr.bf16.mxu0 %v517
    %717 = vmatpush1.bf16.msra.mxu0 %v516
    %718 = vmatprep.subr.bf16.mxu0 %v519
    %719 = vmatpush1.bf16.msra.mxu0 %v518
    %720 = vmatprep.subr.bf16.mxu0 %v521
    %721 = vmatpush1.bf16.msra.mxu0 %v520
    %722 = vmatprep.subr.bf16.mxu0 %v523
    %723 = vmatpush1.bf16.msra.mxu0 %v522
    %724 = vmatprep.subr.bf16.mxu0 %v525
    %725 = vmatpush1.bf16.msra.mxu0 %v524
    %726 = vmatprep.mubr.bf16.mxu0 %v188
    %727 = vmatmul.mubr.bf16.gmra.mrb[0].mxu0 %v187
    %v728 = vpop.f32.mrb[0].mxu0
    %v729 = vadd.f32 %v169, %v728
    %v730 = vpop.f32.mrb[0].mxu0
    %v731 = vadd.f32 %v173, %v730
    %v732 = vpop.f32.mrb[0].mxu0
    %v733 = vpop.f32.mrb[0].mxu0
    %734 = vdwg.mxu0
    %735 = vmatprep.subr.bf16.mxu0 %v527
    %736 = vmatpush1.bf16.msra.mxu0 %v526
    %737 = vmatprep.subr.bf16.mxu0 %v529
    %738 = vmatpush1.bf16.msra.mxu0 %v528
    %739 = vmatprep.subr.bf16.mxu0 %v531
    %740 = vmatpush1.bf16.msra.mxu0 %v530
    %741 = vmatprep.subr.bf16.mxu0 %v533
    %742 = vmatpush1.bf16.msra.mxu0 %v532
    %743 = vmatprep.subr.bf16.mxu0 %v535
    %744 = vmatpush1.bf16.msra.mxu0 %v534
    %745 = vmatprep.subr.bf16.mxu0 %v537
    %746 = vmatpush1.bf16.msra.mxu0 %v536
    %747 = vmatprep.subr.bf16.mxu0 %v539
    %748 = vmatpush1.bf16.msra.mxu0 %v538
    %749 = vmatprep.subr.bf16.mxu0 %v541
    %750 = vmatpush1.bf16.msra.mxu0 %v540
    %751 = vmatprep.subr.bf16.mxu0 %v543
    %752 = vmatpush1.bf16.msra.mxu0 %v542
    %753 = vmatprep.subr.bf16.mxu0 %v545
    %754 = vmatpush1.bf16.msra.mxu0 %v544
    %755 = vmatprep.subr.bf16.mxu0 %v547
    %756 = vmatpush1.bf16.msra.mxu0 %v546
    %757 = vmatprep.subr.bf16.mxu0 %v549
    %758 = vmatpush1.bf16.msra.mxu0 %v548
    %759 = vmatprep.subr.bf16.mxu0 %v551
    %760 = vmatpush1.bf16.msra.mxu0 %v550
    %761 = vmatprep.subr.bf16.mxu0 %v553
    %762 = vmatpush1.bf16.msra.mxu0 %v552
    %763 = vmatprep.subr.bf16.mxu0 %v555
    %764 = vmatpush1.bf16.msra.mxu0 %v554
    %765 = vmatprep.subr.bf16.mxu0 %v557
    %766 = vmatpush1.bf16.msra.mxu0 %v556
    %767 = vmatprep.mubr.bf16.mxu0 %v190
    %768 = vmatmul.mubr.bf16.gmra.mrb[0].mxu0 %v189
    %v769 = vpop.f32.mrb[0].mxu0
    %v770 = vadd.f32 %v729, %v769
    %v771 = vpop.f32.mrb[0].mxu0
    %v772 = vadd.f32 %v731, %v771
    %v773 = vpop.f32.mrb[0].mxu0
    %v774 = vpop.f32.mrb[0].mxu0
    %775 = vdwg.mxu0
    %776 = vmatprep.subr.bf16.mxu0 %v559
    %777 = vmatpush1.bf16.msra.mxu0 %v558
    %778 = vmatprep.subr.bf16.mxu0 %v561
    %779 = vmatpush1.bf16.msra.mxu0 %v560
    %780 = vmatprep.subr.bf16.mxu0 %v563
    %781 = vmatpush1.bf16.msra.mxu0 %v562
    %782 = vmatprep.subr.bf16.mxu0 %v565
    %783 = vmatpush1.bf16.msra.mxu0 %v564
    %784 = vmatprep.subr.bf16.mxu0 %v567
    %785 = vmatpush1.bf16.msra.mxu0 %v566
    %786 = vmatprep.subr.bf16.mxu0 %v569
    %787 = vmatpush1.bf16.msra.mxu0 %v568
    %788 = vmatprep.subr.bf16.mxu0 %v571
    %789 = vmatpush1.bf16.msra.mxu0 %v570
    %790 = vmatprep.subr.bf16.mxu0 %v573
    %791 = vmatpush1.bf16.msra.mxu0 %v572
    %792 = vmatprep.subr.bf16.mxu0 %v575
    %793 = vmatpush1.bf16.msra.mxu0 %v574
    %794 = vmatprep.subr.bf16.mxu0 %v577
    %795 = vmatpush1.bf16.msra.mxu0 %v576
    %796 = vmatprep.subr.bf16.mxu0 %v579
    %797 = vmatpush1.bf16.msra.mxu0 %v578
    %798 = vmatprep.subr.bf16.mxu0 %v581
    %799 = vmatpush1.bf16.msra.mxu0 %v580
    %800 = vmatprep.subr.bf16.mxu0 %v583
    %801 = vmatpush1.bf16.msra.mxu0 %v582
    %802 = vmatprep.subr.bf16.mxu0 %v585
    %803 = vmatpush1.bf16.msra.mxu0 %v584
    %804 = vmatprep.subr.bf16.mxu0 %v587
    %805 = vmatpush1.bf16.msra.mxu0 %v586
    %806 = vmatprep.subr.bf16.mxu0 %v589
    %807 = vmatpush1.bf16.msra.mxu0 %v588
    %808 = vmatprep.mubr.bf16.mxu0 %v192
    %809 = vmatmul.mubr.bf16.gmra.mrb[0].mxu0 %v191
    %v810 = vpop.f32.mrb[0].mxu0
    %v811 = vadd.f32 %v770, %v810
    %v812 = vpop.f32.mrb[0].mxu0
    %v813 = vadd.f32 %v772, %v812
    %v814 = vpop.f32.mrb[0].mxu0
    %v815 = vpop.f32.mrb[0].mxu0
    %816 = vdwg.mxu0
    %817 = vmatprep.subr.bf16.mxu0 %v591
    %818 = vmatpush1.bf16.msra.mxu0 %v590
    %819 = vmatprep.subr.bf16.mxu0 0
    %820 = vmatpush1.bf16.msra.mxu0 0
    %821 = vmatprep.subr.bf16.mxu0 0
    %822 = vmatpush1.bf16.msra.mxu0 0
    %823 = vmatprep.subr.bf16.mxu0 0
    %824 = vmatpush1.bf16.msra.mxu0 0
    %825 = vmatprep.subr.bf16.mxu0 0
    %826 = vmatpush1.bf16.msra.mxu0 0
    %827 = vmatprep.subr.bf16.mxu0 0
    %828 = vmatpush1.bf16.msra.mxu0 0
    %829 = vmatprep.subr.bf16.mxu0 0
    %830 = vmatpush1.bf16.msra.mxu0 0
    %831 = vmatprep.subr.bf16.mxu0 0
    %832 = vmatpush1.bf16.msra.mxu0 0
    %833 = vmatprep.subr.bf16.mxu0 0
    %834 = vmatpush1.bf16.msra.mxu0 0
    %835 = vmatprep.subr.bf16.mxu0 0
    %836 = vmatpush1.bf16.msra.mxu0 0
    %837 = vmatprep.subr.bf16.mxu0 0
    %838 = vmatpush1.bf16.msra.mxu0 0
    %839 = vmatprep.subr.bf16.mxu0 0
    %840 = vmatpush1.bf16.msra.mxu0 0
    %841 = vmatprep.subr.bf16.mxu0 0
    %842 = vmatpush1.bf16.msra.mxu0 0
    %843 = vmatprep.subr.bf16.mxu0 0
    %844 = vmatpush1.bf16.msra.mxu0 0
    %845 = vmatprep.subr.bf16.mxu0 0
    %846 = vmatpush1.bf16.msra.mxu0 0
    %847 = vmatprep.subr.bf16.mxu0 0
    %848 = vmatpush1.bf16.msra.mxu0 0
    %849 = vmatprep.mubr.bf16.mxu0 0
    %850 = vmatmul.mubr.bf16.gmra.mrb[0].mxu0 %v692
    %v851 = vpop.f32.mrb[0].mxu0
    %v852 = vadd.f32 %v811, %v851
    %v853 = vpop.f32.mrb[0].mxu0
    %v854 = vadd.f32 %v813, %v853
    %v855 = vpop.f32.mrb[0].mxu0
    %v856 = vpop.f32.mrb[0].mxu0
    %857 = vdwg.mxu0
    %v858 = vmax.f32 %v852, 0.0
    %v859 = vmax.f32 %v854, 0.0
    %v860 = vpack.c.bf16 %v858, %v858
    %v861 = vpack.c.bf16 %v859, %v859
    %v862 = vld [vmem:[#allocation5] sm:$0xf]
    %v863 = vld [vmem:[#allocation5 + $0x4] sm:$0xf]
    %v864 = vld [vmem:[#allocation5 + $0x8] sm:$0xf]
    %v865 = vld [vmem:[#allocation5 + $0xc] sm:$0xf]
    %v866 = vld [vmem:[#allocation5 + $0x10] sm:$0xf]
    %v867 = vld [vmem:[#allocation5 + $0x14] sm:$0xf]
    %v868 = vld [vmem:[#allocation5 + $0x18] sm:$0xf]
    %v869 = vld [vmem:[#allocation5 + $0x1c] sm:$0xf]
    %v870 = vld [vmem:[#allocation5 + $0x20] sm:$0xf]
    %v871 = vld [vmem:[#allocation5 + $0x24] sm:$0xf]
    %v872 = vld [vmem:[#allocation5 + $0x28] sm:$0xf]
    %v873 = vld [vmem:[#allocation5 + $0x2c] sm:$0xf]
    %v874 = vld [vmem:[#allocation5 + $0x30] sm:$0xf]
    %v875 = vld [vmem:[#allocation5 + $0x34] sm:$0xf]
    %v876 = vld [vmem:[#allocation5 + $0x38] sm:$0xf]
    %v877 = vld [vmem:[#allocation5 + $0x3c] sm:$0xf]
    %v878 = vld [vmem:[#allocation5 + $0x40] sm:$0xf]
    %v879 = vld [vmem:[#allocation5 + $0x44] sm:$0xf]
    %v880 = vld [vmem:[#allocation5 + $0x48] sm:$0xf]
    %v881 = vld [vmem:[#allocation5 + $0x4c] sm:$0xf]
    %v882 = vld [vmem:[#allocation5 + $0x50] sm:$0xf]
    %v883 = vld [vmem:[#allocation5 + $0x54] sm:$0xf]
    %v884 = vld [vmem:[#allocation5 + $0x58] sm:$0xf]
    %v885 = vld [vmem:[#allocation5 + $0x5c] sm:$0xf]
    %v886 = vld [vmem:[#allocation5 + $0x60] sm:$0xf]
    %v887 = vld [vmem:[#allocation5 + $0x64] sm:$0xf]
    %v888 = vld [vmem:[#allocation5 + $0x68] sm:$0xf]
    %v889 = vld [vmem:[#allocation5 + $0x6c] sm:$0xf]
    %v890 = vld [vmem:[#allocation5 + $0x70] sm:$0xf]
    %v891 = vld [vmem:[#allocation5 + $0x74] sm:$0xf]
    %v892 = vld [vmem:[#allocation5 + $0x78] sm:$0xf]
    %v893 = vld [vmem:[#allocation5 + $0x7c] sm:$0xf]
    %v894 = vld [vmem:[%s4] sm:$0x1]
    %v896 = vlaneseq
    %v897 = vshrl.u32 %v896, 7
    %v898 = vsub.s32 0, %v897
    %v899 = vrot.slane %v894, %v898
    %v933 = vunpack.c.l.b16 %v862
    %v934 = vunpack.c.l.b16 %v863
    %v935 = vunpack.c.l.b16 %v864
    %v936 = vunpack.c.l.b16 %v865
    %v937 = vunpack.c.l.b16 %v866
    %v938 = vunpack.c.l.b16 %v867
    %v939 = vunpack.c.l.b16 %v868
    %v940 = vunpack.c.l.b16 %v869
    %v941 = vunpack.c.l.b16 %v870
    %v942 = vunpack.c.l.b16 %v871
    %v943 = vunpack.c.l.b16 %v872
    %v944 = vunpack.c.l.b16 %v873
    %v945 = vunpack.c.l.b16 %v874
    %v946 = vunpack.c.l.b16 %v875
    %v947 = vunpack.c.l.b16 %v876
    %v948 = vunpack.c.l.b16 %v877
    %v949 = vunpack.c.l.b16 %v878
    %v950 = vunpack.c.l.b16 %v879
    %v951 = vunpack.c.l.b16 %v880
    %v952 = vunpack.c.l.b16 %v881
    %v953 = vunpack.c.l.b16 %v882
    %v954 = vunpack.c.l.b16 %v883
    %v955 = vunpack.c.l.b16 %v884
    %v956 = vunpack.c.l.b16 %v885
    %v957 = vunpack.c.l.b16 %v886
    %v958 = vunpack.c.l.b16 %v887
    %v959 = vunpack.c.l.b16 %v888
    %v960 = vunpack.c.l.b16 %v889
    %v961 = vunpack.c.l.b16 %v890
    %v962 = vunpack.c.l.b16 %v891
    %v963 = vunpack.c.l.b16 %v892
    %v964 = vunpack.c.l.b16 %v893
    %v965 = vpack.c.b16 %v934, %v933
    %v966 = vpack.c.b16 %v936, %v935
    %v967 = vpack.c.b16 %v938, %v937
    %v968 = vpack.c.b16 %v940, %v939
    %v969 = vpack.c.b16 %v942, %v941
    %v970 = vpack.c.b16 %v944, %v943
    %v971 = vpack.c.b16 %v946, %v945
    %v972 = vpack.c.b16 %v948, %v947
    %v973 = vpack.c.b16 %v950, %v949
    %v974 = vpack.c.b16 %v952, %v951
    %v975 = vpack.c.b16 %v954, %v953
    %v976 = vpack.c.b16 %v956, %v955
    %v977 = vpack.c.b16 %v958, %v957
    %v978 = vpack.c.b16 %v960, %v959
    %v979 = vpack.c.b16 %v962, %v961
    %v980 = vpack.c.b16 %v964, %v963
    %997 = vmatprep.subr.bf16.mxu0 0
    %998 = vmatpush1.bf16.msra.mxu0 %v965
    %999 = vmatprep.subr.bf16.mxu0 0
    %1000 = vmatpush1.bf16.msra.mxu0 %v966
    %1001 = vmatprep.subr.bf16.mxu0 0
    %1002 = vmatpush1.bf16.msra.mxu0 %v967
    %1003 = vmatprep.subr.bf16.mxu0 0
    %1004 = vmatpush1.bf16.msra.mxu0 %v968
    %1005 = vmatprep.subr.bf16.mxu0 0
    %1006 = vmatpush1.bf16.msra.mxu0 %v969
    %1007 = vmatprep.subr.bf16.mxu0 0
    %1008 = vmatpush1.bf16.msra.mxu0 %v970
    %1009 = vmatprep.subr.bf16.mxu0 0
    %1010 = vmatpush1.bf16.msra.mxu0 %v971
    %1011 = vmatprep.subr.bf16.mxu0 0
    %1012 = vmatpush1.bf16.msra.mxu0 %v972
    %1013 = vmatprep.subr.bf16.mxu0 0
    %1014 = vmatpush1.bf16.msra.mxu0 %v973
    %1015 = vmatprep.subr.bf16.mxu0 0
    %1016 = vmatpush1.bf16.msra.mxu0 %v974
    %1017 = vmatprep.subr.bf16.mxu0 0
    %1018 = vmatpush1.bf16.msra.mxu0 %v975
    %1019 = vmatprep.subr.bf16.mxu0 0
    %1020 = vmatpush1.bf16.msra.mxu0 %v976
    %1021 = vmatprep.subr.bf16.mxu0 0
    %1022 = vmatpush1.bf16.msra.mxu0 %v977
    %1023 = vmatprep.subr.bf16.mxu0 0
    %1024 = vmatpush1.bf16.msra.mxu0 %v978
    %1025 = vmatprep.subr.bf16.mxu0 0
    %1026 = vmatpush1.bf16.msra.mxu0 %v979
    %1027 = vmatprep.subr.bf16.mxu0 0
    %1028 = vmatpush1.bf16.msra.mxu0 %v980
    %1029 = vmatprep.mubr.bf16.mxu0 %v861
    %1030 = vmatmul.mubr.bf16.gmra.mrb[0].mxu0 %v860
    %v1031 = vpop.f32.mrb[0].mxu0
    %v1032 = vadd.f32 %v899, %v1031
    %v1033 = vpop.f32.mrb[0].mxu0
    %v1034 = vpop.f32.mrb[0].mxu0
    %v1035 = vpop.f32.mrb[0].mxu0
    %1036 = vdwg.mxu0
    %v1037 = vmax.f32 %v1032, 0.0
    %v1038 = vpack.c.bf16 %v1037, %v1037
    %v1039 = vld [vmem:[%s5] sm:$0xf]
    %v1040 = vld [vmem:[%s5 + $0x4] sm:$0xf]
    %v1041 = vld [vmem:[%s5 + $0x8] sm:$0xf]
    %v1042 = vld [vmem:[%s5 + $0xc] sm:$0xf]
    %v1043 = vld [vmem:[%s5 + $0x10] sm:$0xf]
    %v1044 = vld [vmem:[%s5 + $0x14] sm:$0xf]
    %v1045 = vld [vmem:[%s5 + $0x18] sm:$0xf]
    %v1046 = vld [vmem:[%s5 + $0x1c] sm:$0xf]
    %v1047 = vld [vmem:[%s5 + $0x20] sm:$0xf]
    %v1048 = vld [vmem:[%s5 + $0x24] sm:$0xf]
    %v1049 = vld [vmem:[%s5 + $0x28] sm:$0xf]
    %v1050 = vld [vmem:[%s5 + $0x2c] sm:$0xf]
    %v1051 = vld [vmem:[%s5 + $0x30] sm:$0xf]
    %v1052 = vld [vmem:[%s5 + $0x34] sm:$0xf]
    %v1053 = vld [vmem:[%s5 + $0x38] sm:$0xf]
    %v1054 = vld [vmem:[%s5 + $0x3c] sm:$0xf]
    %v1055 = vld [vmem:[%s6] sm:$0x1]
    %v1057 = vlaneseq
    %v1058 = vshrl.u32 %v1057, 7
    %v1059 = vsub.s32 0, %v1058
    %v1060 = vrot.slane %v1055, %v1059
    %v1078 = vunpack.c.l.b16 %v1039
    %v1079 = vunpack.c.l.b16 %v1040
    %v1080 = vunpack.c.l.b16 %v1041
    %v1081 = vunpack.c.l.b16 %v1042
    %v1082 = vunpack.c.l.b16 %v1043
    %v1083 = vunpack.c.l.b16 %v1044
    %v1084 = vunpack.c.l.b16 %v1045
    %v1085 = vunpack.c.l.b16 %v1046
    %v1086 = vunpack.c.l.b16 %v1047
    %v1087 = vunpack.c.l.b16 %v1048
    %v1088 = vunpack.c.l.b16 %v1049
    %v1089 = vunpack.c.l.b16 %v1050
    %v1090 = vunpack.c.l.b16 %v1051
    %v1091 = vunpack.c.l.b16 %v1052
    %v1092 = vunpack.c.l.b16 %v1053
    %v1093 = vunpack.c.l.b16 %v1054
    %v1094 = vpack.c.b16 %v1079, %v1078
    %v1095 = vpack.c.b16 %v1081, %v1080
    %v1096 = vpack.c.b16 %v1083, %v1082
    %v1097 = vpack.c.b16 %v1085, %v1084
    %v1098 = vpack.c.b16 %v1087, %v1086
    %v1099 = vpack.c.b16 %v1089, %v1088
    %v1100 = vpack.c.b16 %v1091, %v1090
    %v1101 = vpack.c.b16 %v1093, %v1092
    %1110 = vmatprep.subr.bf16.mxu0 0
    %1111 = vmatpush1.bf16.msra.mxu0 %v1094
    %1112 = vmatprep.subr.bf16.mxu0 0
    %1113 = vmatpush1.bf16.msra.mxu0 %v1095
    %1114 = vmatprep.subr.bf16.mxu0 0
    %1115 = vmatpush1.bf16.msra.mxu0 %v1096
    %1116 = vmatprep.subr.bf16.mxu0 0
    %1117 = vmatpush1.bf16.msra.mxu0 %v1097
    %1118 = vmatprep.subr.bf16.mxu0 0
    %1119 = vmatpush1.bf16.msra.mxu0 %v1098
    %1120 = vmatprep.subr.bf16.mxu0 0
    %1121 = vmatpush1.bf16.msra.mxu0 %v1099
    %1122 = vmatprep.subr.bf16.mxu0 0
    %1123 = vmatpush1.bf16.msra.mxu0 %v1100
    %1124 = vmatprep.subr.bf16.mxu0 0
    %1125 = vmatpush1.bf16.msra.mxu0 %v1101
    %1126 = vmatprep.subr.bf16.mxu0 0
    %1127 = vmatpush1.bf16.msra.mxu0 0
    %1128 = vmatprep.subr.bf16.mxu0 0
    %1129 = vmatpush1.bf16.msra.mxu0 0
    %1130 = vmatprep.subr.bf16.mxu0 0
    %1131 = vmatpush1.bf16.msra.mxu0 0
    %1132 = vmatprep.subr.bf16.mxu0 0
    %1133 = vmatpush1.bf16.msra.mxu0 0
    %1134 = vmatprep.subr.bf16.mxu0 0
    %1135 = vmatpush1.bf16.msra.mxu0 0
    %1136 = vmatprep.subr.bf16.mxu0 0
    %1137 = vmatpush1.bf16.msra.mxu0 0
    %1138 = vmatprep.subr.bf16.mxu0 0
    %1139 = vmatpush1.bf16.msra.mxu0 0
    %1140 = vmatprep.subr.bf16.mxu0 0
    %1141 = vmatpush1.bf16.msra.mxu0 0
    %1142 = vmatprep.mubr.bf16.mxu0 0
    %1143 = vmatmul.mubr.bf16.gmra.mrb[0].mxu0 %v1038
    %v1144 = vpop.f32.mrb[0].mxu0
    %v1145 = vadd.f32 %v1060, %v1144
    %v1146 = vpop.f32.mrb[0].mxu0
    %v1147 = vpop.f32.mrb[0].mxu0
    %v1148 = vpop.f32.mrb[0].mxu0
    %1149 = vdwg.mxu0
    %v1150 = vmax.f32 %v1145, 0.0
    %v1151 = vpack.c.bf16 %v1150, %v1150
    %v1152 = vld [vmem:[%s7] sm:$0xf]
    %v1153 = vld [vmem:[%s7 + $0x4] sm:$0xf]
    %v1154 = vld [vmem:[%s7 + $0x8] sm:$0xf]
    %v1155 = vld [vmem:[%s7 + $0xc] sm:$0xf]
    %v1156 = vld [vmem:[%s7 + $0x10] sm:$0xf]
    %v1157 = vld [vmem:[%s7 + $0x14] sm:$0xf]
    %v1158 = vld [vmem:[%s7 + $0x18] sm:$0xf]
    %v1159 = vld [vmem:[%s7 + $0x1c] sm:$0xf]
    %v1160 = vld [vmem:[%s8] sm:$0x1]
    %v1162 = vlaneseq
    %v1163 = vshrl.u32 %v1162, 7
    %v1164 = vsub.s32 0, %v1163
    %v1165 = vrot.slane %v1160, %v1164
    %v1175 = vunpack.c.l.b16 %v1152
    %v1176 = vunpack.c.l.b16 %v1153
    %v1177 = vunpack.c.l.b16 %v1154
    %v1178 = vunpack.c.l.b16 %v1155
    %v1179 = vunpack.c.l.b16 %v1156
    %v1180 = vunpack.c.l.b16 %v1157
    %v1181 = vunpack.c.l.b16 %v1158
    %v1182 = vunpack.c.l.b16 %v1159
    %v1183 = vpack.c.b16 %v1176, %v1175
    %v1184 = vpack.c.b16 %v1178, %v1177
    %v1185 = vpack.c.b16 %v1180, %v1179
    %v1186 = vpack.c.b16 %v1182, %v1181
    %vm1191 = vcmask 523264
    %v1193 = vsel %vm1191, %v1151, 0
    %1195 = vmatprep.subr.bf16.mxu0 0
    %1196 = vmatpush1.bf16.msra.mxu0 %v1183
    %1197 = vmatprep.subr.bf16.mxu0 0
    %1198 = vmatpush1.bf16.msra.mxu0 %v1184
    %1199 = vmatprep.subr.bf16.mxu0 0
    %1200 = vmatpush1.bf16.msra.mxu0 %v1185
    %1201 = vmatprep.subr.bf16.mxu0 0
    %1202 = vmatpush1.bf16.msra.mxu0 %v1186
    %1203 = vmatprep.subr.bf16.mxu0 0
    %1204 = vmatpush1.bf16.msra.mxu0 0
    %1205 = vmatprep.subr.bf16.mxu0 0
    %1206 = vmatpush1.bf16.msra.mxu0 0
    %1207 = vmatprep.subr.bf16.mxu0 0
    %1208 = vmatpush1.bf16.msra.mxu0 0
    %1209 = vmatprep.subr.bf16.mxu0 0
    %1210 = vmatpush1.bf16.msra.mxu0 0
    %1211 = vmatprep.subr.bf16.mxu0 0
    %1212 = vmatpush1.bf16.msra.mxu0 0
    %1213 = vmatprep.subr.bf16.mxu0 0
    %1214 = vmatpush1.bf16.msra.mxu0 0
    %1215 = vmatprep.subr.bf16.mxu0 0
    %1216 = vmatpush1.bf16.msra.mxu0 0
    %1217 = vmatprep.subr.bf16.mxu0 0
    %1218 = vmatpush1.bf16.msra.mxu0 0
    %1219 = vmatprep.subr.bf16.mxu0 0
    %1220 = vmatpush1.bf16.msra.mxu0 0
    %1221 = vmatprep.subr.bf16.mxu0 0
    %1222 = vmatpush1.bf16.msra.mxu0 0
    %1223 = vmatprep.subr.bf16.mxu0 0
    %1224 = vmatpush1.bf16.msra.mxu0 0
    %1225 = vmatprep.subr.bf16.mxu0 0
    %1226 = vmatpush1.bf16.msra.mxu0 0
    %1227 = vmatprep.mubr.bf16.mxu0 0
    %1228 = vmatmul.mubr.bf16.gmra.mrb[0].mxu0 %v1193
    %v1229 = vpop.f32.mrb[0].mxu0
    %v1230 = vadd.f32 %v1165, %v1229
    %v1231 = vpop.f32.mrb[0].mxu0
    %v1232 = vpop.f32.mrb[0].mxu0
    %v1233 = vpop.f32.mrb[0].mxu0
    %1234 = vdwg.mxu0
    %1235 = vst [vmem:[#allocation7] sm:$0xff] %v1230
    // Predicated region
    $region46: #{tpu_custom_call.1} parent=1 // pred_check
      _
    $region47: #{tpu_custom_call.1} parent=1 // pred_check_branch
      %1237 = sbr.rel (0) target = $region49
    $region48: #{tpu_custom_call.1} parent=1 // pred_region
      %s1239 = ssub.s32 128, 128
      %1240 = vsyncadd [#allocation4], %s1239
      %s1242 = sshll.u32 [#allocation7], 4
      %s1243 = int_to_ptr.vmem [resolvable:$true] %s1242
      %1245 = dma.vmem_to_hbm [thread:$0]  %s1243, 128, %s9, [#allocation4]
    $region49: #{tpu_custom_call.1} parent=1 // pred_fallthru
      _
    // Predicated region
    $region50: #{tpu_custom_call.1} parent=1 // pred_check
      _
    $region51: #{tpu_custom_call.1} parent=1 // pred_check_branch
      %1247 = sbr.rel (0) target = $region53
    $region52: #{tpu_custom_call.1} parent=1 // pred_region
      %1248 = dma.done [#allocation4], 128
    $region53: #{tpu_custom_call.1} parent=1 // pred_fallthru
      _
    %1249 = vsyncpa [#allocation3], 1
    %1250 = vsyncpa [#allocation6], 1
    %1251 = vsyncpa [#allocation4], 1

</llo_original>
